<compile_context>
chip_gen: v7x
topology: tpu7x:2x2x1
jax: 0.10.0
libtpu: 0.0.40
codegen_flags: <defaults>
</compile_context>

<pallas_src>
import functools

import jax
import jax.numpy as jnp
from jax.experimental import pallas as pl
from jax.experimental.pallas import tpu as pltpu


def _round_up(a, b):
    return (a + b - 1) // b * b


def time2vec_kernel(x_ref, w_ref, b_ref, mask_ref, o_ref, *, dp):
    # x_ref:                 (TM, C)   C = fold * input_dim source columns
    # w_ref/b_ref/mask_ref:  (1, W)    W = C * dp  (lane-dense constants)
    # o_ref:                 (TM, W)
    x = x_ref[...].astype(jnp.float32)
    w = w_ref[...].astype(jnp.float32)
    b = b_ref[...].astype(jnp.float32)
    mask = mask_ref[...]

    tm, c = x.shape
    # Output lane j reads source column j // dp: expand each source column
    # across its dp output lanes with a static (trace-time) broadcast+concat.
    parts = [jnp.broadcast_to(x[:, i:i + 1], (tm, dp)) for i in range(c)]
    xe = jnp.concatenate(parts, axis=-1)                 # (TM, W)

    aff = xe * w + b                                     # (1, W) bcast over rows
    lin = jnp.broadcast_to(mask, aff.shape) > 0.5        # 1.0 -> keep linear
    out = jnp.where(lin, aff, jnp.sin(aff))              # sin on EUP slot
    o_ref[...] = out.astype(o_ref.dtype)


def time2vec(x, embed_weight, embed_bias, *, tile_rows=4096, out_dtype=None):
    """x: (B, T, input_dim) -> (B, T, embed_dim), embed_dim = I * Dp."""
    B, T, I = x.shape
    I_w, dp = embed_weight.shape
    assert I_w == I
    E = I * dp
    N = B * T
    out_dtype = x.dtype if out_dtype is None else out_dtype  # bf16 possible for ~2x HBM win

    # Fold R original rows per kernel row so the output width is 128 lanes
    # whenever possible (otherwise W == E == full array dim, still legal).
    if E % 128 == 0:
        R = 1
    elif 128 % E == 0:
        R = 128 // E
    else:
        R = 1
    W = R * E          # output columns per folded row
    C = R * I          # input  columns per folded row

    # Folded rows, tile size (multiple of 8 sublanes), zero-padding for any N.
    M = pl.cdiv(N, R)
    tile_m = min(_round_up(pl.cdiv(tile_rows, R), 8), _round_up(M, 8))
    # NOTE(v7x): if M is huge, keep tile_m small enough that the grid has >=8
    # steps so both TensorCores stay busy; at tile_rows=4096 this holds for any
    # realistically sized B*T.
    M_pad = _round_up(M, tile_m)
    N_pad = M_pad * R

    x_flat = x.reshape(N, I)
    if N_pad != N:
        x_flat = jnp.pad(x_flat, ((0, N_pad - N), (0, 0)))
    x_fold = x_flat.reshape(M_pad, C)

    # Lane-dense constants: weight/bias flattened row-major (i-major, k-minor)
    # and tiled R times; mask marks the linear (k == 0) column of every group.
    w_row = jnp.tile(embed_weight.reshape(1, E), (1, R)).astype(jnp.float32)
    b_row = jnp.tile(embed_bias.reshape(1, E), (1, R)).astype(jnp.float32)
    mask_row = jnp.tile(
        (jnp.arange(E) % dp == 0).astype(jnp.float32).reshape(1, E), (1, R))

    kernel = functools.partial(time2vec_kernel, dp=dp)

    out_fold = pl.pallas_call(
        kernel,
        out_shape=jax.ShapeDtypeStruct((M_pad, W), out_dtype),
        grid_spec=pltpu.PrefetchScalarGridSpec(
            num_scalar_prefetch=0,
            grid=(M_pad // tile_m,),
            in_specs=[
                pl.BlockSpec((tile_m, C), lambda i: (i, 0)),
                pl.BlockSpec((1, W), lambda i: (0, 0)),
                pl.BlockSpec((1, W), lambda i: (0, 0)),
                pl.BlockSpec((1, W), lambda i: (0, 0)),
            ],
            out_specs=pl.BlockSpec((tile_m, W), lambda i: (i, 0)),
        ),
        compiler_params=pltpu.CompilerParams(
            dimension_semantics=("parallel",),
        ),
    )(x_fold, w_row, b_row, mask_row)

    # Undo fold + padding; all row-major reshapes (== PyTorch's .view).
    return out_fold.reshape(N_pad, E)[:N].reshape(B, T, E)


def time2vec_ref(x, w, b):
    aff = x[..., :, None] * w + b                    # (B, T, I, Dp)
    lin = aff[..., :1]
    rest = jnp.sin(aff[..., 1:])
    out = jnp.concatenate([lin, rest], axis=-1)
    B, T = x.shape[:2]
    return out.reshape(B, T, -1)


if __name__ == "__main__":
    # Module config (small): input_dim=4, embed_dim=32 -> per-input Dp=8
    input_dim = 4
    embed_dim = 32
    Dp = embed_dim // input_dim

    B, T = 2, 8

    key = jax.random.PRNGKey(0)
    kx, kw, kb = jax.random.split(key, 3)
    x = jax.random.normal(kx, (B, T, input_dim), dtype=jnp.float32)
    embed_weight = jax.random.normal(kw, (input_dim, Dp), dtype=jnp.float32)
    embed_bias = jax.random.normal(kb, (input_dim, Dp), dtype=jnp.float32)

    out = time2vec(x, embed_weight, embed_bias)
    out = jax.block_until_ready(out)

    ref = time2vec_ref(x, embed_weight, embed_bias)
    assert out.shape == (B, T, embed_dim), out.shape
    assert jnp.allclose(out, ref, atol=1e-5, rtol=1e-5), "mismatch vs reference"

    print("KERNEL_OK")
</pallas_src>

<mosaic_0001>
module attributes {stable_mosaic.version = 11 : i64} {
  func.func @time2vec_kernel(%arg0: i32, %arg1: memref<8x16xf32, #tpu.memory_space<vmem>>, %arg2: memref<1x128xf32, #tpu.memory_space<vmem>>, %arg3: memref<1x128xf32, #tpu.memory_space<vmem>>, %arg4: memref<1x128xf32, #tpu.memory_space<vmem>>, %arg5: memref<8x128xf32, #tpu.memory_space<vmem>>) attributes {dimension_semantics = [#tpu.dimension_semantics<parallel>], iteration_bounds = array<i64: 1>, scalar_prefetch = 0 : i64, scratch_operands = 0 : i64, tpu.core_type = #tpu.core_type<tc>, window_params = [{transform_indices = @transform_0, window_bounds = array<i64: 8, 16>}, {pipeline_mode = #tpu.pipeline_mode<synchronous>, transform_indices = @transform_1, window_bounds = array<i64: 1, 128>}, {pipeline_mode = #tpu.pipeline_mode<synchronous>, transform_indices = @transform_2, window_bounds = array<i64: 1, 128>}, {pipeline_mode = #tpu.pipeline_mode<synchronous>, transform_indices = @transform_3, window_bounds = array<i64: 1, 128>}, {transform_indices = @transform_4, window_bounds = array<i64: 8, 128>}]} {
    %c0 = arith.constant 0 : index
    %c0_0 = arith.constant 0 : index
    %0 = vector.load %arg1[%c0, %c0_0] : memref<8x16xf32, #tpu.memory_space<vmem>>, vector<8x16xf32>
    %c0_1 = arith.constant 0 : index
    %c0_2 = arith.constant 0 : index
    %1 = vector.load %arg2[%c0_1, %c0_2] : memref<1x128xf32, #tpu.memory_space<vmem>>, vector<1x128xf32>
    %c0_3 = arith.constant 0 : index
    %c0_4 = arith.constant 0 : index
    %2 = vector.load %arg3[%c0_3, %c0_4] : memref<1x128xf32, #tpu.memory_space<vmem>>, vector<1x128xf32>
    %c0_5 = arith.constant 0 : index
    %c0_6 = arith.constant 0 : index
    %3 = vector.load %arg4[%c0_5, %c0_6] : memref<1x128xf32, #tpu.memory_space<vmem>>, vector<1x128xf32>
    %4 = vector.extract_strided_slice %0 {offsets = [0, 0], sizes = [8, 1], strides = [1, 1]} : vector<8x16xf32> to vector<8x1xf32>
    %5 = vector.shape_cast %4 : vector<8x1xf32> to vector<8x1xf32>
    %6 = vector.broadcast %5 : vector<8x1xf32> to vector<8x8xf32>
    %7 = vector.extract_strided_slice %0 {offsets = [0, 1], sizes = [8, 1], strides = [1, 1]} : vector<8x16xf32> to vector<8x1xf32>
    %8 = vector.shape_cast %7 : vector<8x1xf32> to vector<8x1xf32>
    %9 = vector.broadcast %8 : vector<8x1xf32> to vector<8x8xf32>
    %10 = vector.extract_strided_slice %0 {offsets = [0, 2], sizes = [8, 1], strides = [1, 1]} : vector<8x16xf32> to vector<8x1xf32>
    %11 = vector.shape_cast %10 : vector<8x1xf32> to vector<8x1xf32>
    %12 = vector.broadcast %11 : vector<8x1xf32> to vector<8x8xf32>
    %13 = vector.extract_strided_slice %0 {offsets = [0, 3], sizes = [8, 1], strides = [1, 1]} : vector<8x16xf32> to vector<8x1xf32>
    %14 = vector.shape_cast %13 : vector<8x1xf32> to vector<8x1xf32>
    %15 = vector.broadcast %14 : vector<8x1xf32> to vector<8x8xf32>
    %16 = vector.extract_strided_slice %0 {offsets = [0, 4], sizes = [8, 1], strides = [1, 1]} : vector<8x16xf32> to vector<8x1xf32>
    %17 = vector.shape_cast %16 : vector<8x1xf32> to vector<8x1xf32>
    %18 = vector.broadcast %17 : vector<8x1xf32> to vector<8x8xf32>
    %19 = vector.extract_strided_slice %0 {offsets = [0, 5], sizes = [8, 1], strides = [1, 1]} : vector<8x16xf32> to vector<8x1xf32>
    %20 = vector.shape_cast %19 : vector<8x1xf32> to vector<8x1xf32>
    %21 = vector.broadcast %20 : vector<8x1xf32> to vector<8x8xf32>
    %22 = vector.extract_strided_slice %0 {offsets = [0, 6], sizes = [8, 1], strides = [1, 1]} : vector<8x16xf32> to vector<8x1xf32>
    %23 = vector.shape_cast %22 : vector<8x1xf32> to vector<8x1xf32>
    %24 = vector.broadcast %23 : vector<8x1xf32> to vector<8x8xf32>
    %25 = vector.extract_strided_slice %0 {offsets = [0, 7], sizes = [8, 1], strides = [1, 1]} : vector<8x16xf32> to vector<8x1xf32>
    %26 = vector.shape_cast %25 : vector<8x1xf32> to vector<8x1xf32>
    %27 = vector.broadcast %26 : vector<8x1xf32> to vector<8x8xf32>
    %28 = vector.extract_strided_slice %0 {offsets = [0, 8], sizes = [8, 1], strides = [1, 1]} : vector<8x16xf32> to vector<8x1xf32>
    %29 = vector.shape_cast %28 : vector<8x1xf32> to vector<8x1xf32>
    %30 = vector.broadcast %29 : vector<8x1xf32> to vector<8x8xf32>
    %31 = vector.extract_strided_slice %0 {offsets = [0, 9], sizes = [8, 1], strides = [1, 1]} : vector<8x16xf32> to vector<8x1xf32>
    %32 = vector.shape_cast %31 : vector<8x1xf32> to vector<8x1xf32>
    %33 = vector.broadcast %32 : vector<8x1xf32> to vector<8x8xf32>
    %34 = vector.extract_strided_slice %0 {offsets = [0, 10], sizes = [8, 1], strides = [1, 1]} : vector<8x16xf32> to vector<8x1xf32>
    %35 = vector.shape_cast %34 : vector<8x1xf32> to vector<8x1xf32>
    %36 = vector.broadcast %35 : vector<8x1xf32> to vector<8x8xf32>
    %37 = vector.extract_strided_slice %0 {offsets = [0, 11], sizes = [8, 1], strides = [1, 1]} : vector<8x16xf32> to vector<8x1xf32>
    %38 = vector.shape_cast %37 : vector<8x1xf32> to vector<8x1xf32>
    %39 = vector.broadcast %38 : vector<8x1xf32> to vector<8x8xf32>
    %40 = vector.extract_strided_slice %0 {offsets = [0, 12], sizes = [8, 1], strides = [1, 1]} : vector<8x16xf32> to vector<8x1xf32>
    %41 = vector.shape_cast %40 : vector<8x1xf32> to vector<8x1xf32>
    %42 = vector.broadcast %41 : vector<8x1xf32> to vector<8x8xf32>
    %43 = vector.extract_strided_slice %0 {offsets = [0, 13], sizes = [8, 1], strides = [1, 1]} : vector<8x16xf32> to vector<8x1xf32>
    %44 = vector.shape_cast %43 : vector<8x1xf32> to vector<8x1xf32>
    %45 = vector.broadcast %44 : vector<8x1xf32> to vector<8x8xf32>
    %46 = vector.extract_strided_slice %0 {offsets = [0, 14], sizes = [8, 1], strides = [1, 1]} : vector<8x16xf32> to vector<8x1xf32>
    %47 = vector.shape_cast %46 : vector<8x1xf32> to vector<8x1xf32>
    %48 = vector.broadcast %47 : vector<8x1xf32> to vector<8x8xf32>
    %49 = vector.extract_strided_slice %0 {offsets = [0, 15], sizes = [8, 1], strides = [1, 1]} : vector<8x16xf32> to vector<8x1xf32>
    %50 = vector.shape_cast %49 : vector<8x1xf32> to vector<8x1xf32>
    %51 = vector.broadcast %50 : vector<8x1xf32> to vector<8x8xf32>
    %52 = tpu.concatenate %6, %9, %12, %15, %18, %21, %24, %27, %30, %33, %36, %39, %42, %45, %48, %51 in 1 : vector<8x8xf32>, vector<8x8xf32>, vector<8x8xf32>, vector<8x8xf32>, vector<8x8xf32>, vector<8x8xf32>, vector<8x8xf32>, vector<8x8xf32>, vector<8x8xf32>, vector<8x8xf32>, vector<8x8xf32>, vector<8x8xf32>, vector<8x8xf32>, vector<8x8xf32>, vector<8x8xf32>, vector<8x8xf32> -> vector<8x128xf32>
    %53 = vector.broadcast %1 : vector<1x128xf32> to vector<8x128xf32>
    %54 = arith.mulf %52, %53 : vector<8x128xf32>
    %55 = vector.broadcast %2 : vector<1x128xf32> to vector<8x128xf32>
    %56 = arith.addf %54, %55 : vector<8x128xf32>
    %57 = vector.shape_cast %3 : vector<1x128xf32> to vector<1x128xf32>
    %58 = vector.broadcast %57 : vector<1x128xf32> to vector<8x128xf32>
    %cst = arith.constant 5.000000e-01 : f32
    %59 = vector.broadcast %cst : f32 to vector<8x128xf32>
    %60 = arith.cmpf ogt, %58, %59 : vector<8x128xf32>
    %61 = math.sin %56 : vector<8x128xf32>
    %62 = arith.select %60, %56, %61 : vector<8x128xi1>, vector<8x128xf32>
    %c0_7 = arith.constant 0 : index
    %c0_8 = arith.constant 0 : index
    %63 = vector.load %arg5[%c0_7, %c0_8] : memref<8x128xf32, #tpu.memory_space<vmem>>, vector<8x128xf32>
    tpu.vector_store %arg5[%c0_7, %c0_8], %62 {strides = array<i32>} : memref<8x128xf32, #tpu.memory_space<vmem>>, vector<8x128xf32>,
    return
  }
  func.func @transform_0(%arg0: i32) -> (i32, i32) {
    %c0_i32 = arith.constant 0 : i32
    %c0_i32_0 = arith.constant 0 : i32
    return %arg0, %c0_i32 : i32, i32
  }
  func.func @transform_1(%arg0: i32) -> (i32, i32) {
    %c0_i32 = arith.constant 0 : i32
    %c0_i32_0 = arith.constant 0 : i32
    %c0_i32_1 = arith.constant 0 : i32
    return %c0_i32, %c0_i32_0 : i32, i32
  }
  func.func @transform_2(%arg0: i32) -> (i32, i32) {
    %c0_i32 = arith.constant 0 : i32
    %c0_i32_0 = arith.constant 0 : i32
    %c0_i32_1 = arith.constant 0 : i32
    return %c0_i32, %c0_i32_0 : i32, i32
  }
  func.func @transform_3(%arg0: i32) -> (i32, i32) {
    %c0_i32 = arith.constant 0 : i32
    %c0_i32_0 = arith.constant 0 : i32
    %c0_i32_1 = arith.constant 0 : i32
    return %c0_i32, %c0_i32_0 : i32, i32
  }
  func.func @transform_4(%arg0: i32) -> (i32, i32) {
    %c0_i32 = arith.constant 0 : i32
    %c0_i32_0 = arith.constant 0 : i32
    return %arg0, %c0_i32 : i32, i32
  }
}

</mosaic_0001>

<llo_original>
// kernel: tpu_custom_call.1
$region0: #{tpu_custom_call.1}
  #allocation0 [shape = 'u32[]', space=smem, size = 0x4, offset = 0x4, fixed_abs, tag = 'smem constant byte address 0x4 - core index']
  #allocation1 [shape = 'u32[144,128]{1,0:T(1,128)}', space=vmem, size = 0x12000, scoped, tag = 'internal scratch']
  %s0 = inlined_call_operand.hbm [shape: f32[8,16], index: 0, kind: input, shape index: {}]
  %s1 = inlined_call_operand.vmem [shape: f32[1,128], index: 1, kind: input, shape index: {}]
  %s2 = inlined_call_operand.vmem [shape: f32[1,128], index: 2, kind: input, shape index: {}]
  %s3 = inlined_call_operand.vmem [shape: f32[1,128], index: 3, kind: input, shape index: {}]
  %s4 = inlined_call_operand.hbm [shape: f32[8,128], index: 4, kind: output, shape index: {}]
  %s5 = sld [smem:[#allocation0]]
  $region30: #{tpu_custom_call.1} parent=0
    _
  %s7 = ssub.s32 1, %s5
  %s8 = scalar_select 0, %s7, %s5
  $region1: #{tpu_custom_call.1} parent=0
    #allocation2 [shape = 'u8[4096]{0}', space=vmem, size = 0x1000, scoped, tag = 'input window, operand 0, single buffered']
    #allocation3 [shape = 's32[1]{0}', space=sflag, size = 0x4, scoped, tag = 'scoped memory for tpu_custom_call.1']
    #allocation4 [shape = 's32[1]{0}', space=sflag, size = 0x4, scoped, tag = 'scoped memory for tpu_custom_call.1']
    #allocation5 [shape = 'u8[4096]{0}', space=vmem, size = 0x1000, scoped, tag = 'output window, operand 0, single buffered']
    %9 = vsyncpa [#allocation3], 0
    %10 = vsyncpa [#allocation4], 0
    // Predicated region
    $region2: #{tpu_custom_call.1} parent=1 // pred_check
      _
    $region3: #{tpu_custom_call.1} parent=1 // pred_check_branch
      %12 = sbr.rel (0) target = $region5
    $region4: #{tpu_custom_call.1} parent=1 // pred_region
      %s14 = ssub.s32 128, 128
      %15 = vsyncadd [#allocation3], %s14
      %s17 = sshll.u32 [#allocation2], 4
      %s18 = int_to_ptr.vmem [resolvable:$true] %s17
      %20 = dma.hbm_to_vmem [thread:$0]  %s0, 128, %s18, [#allocation3]
    $region5: #{tpu_custom_call.1} parent=1 // pred_fallthru
      _
    // Predicated region
    $region6: #{tpu_custom_call.1} parent=1 // pred_check
      _
    $region7: #{tpu_custom_call.1} parent=1 // pred_check_branch
      %22 = sbr.rel (0) target = $region9
    $region8: #{tpu_custom_call.1} parent=1 // pred_region
      _
    $region9: #{tpu_custom_call.1} parent=1 // pred_fallthru
      _
    // Predicated region
    $region10: #{tpu_custom_call.1} parent=1 // pred_check
      _
    $region11: #{tpu_custom_call.1} parent=1 // pred_check_branch
      %24 = sbr.rel (0) target = $region13
    $region12: #{tpu_custom_call.1} parent=1 // pred_region
      _
    $region13: #{tpu_custom_call.1} parent=1 // pred_fallthru
      _
    // Predicated region
    $region14: #{tpu_custom_call.1} parent=1 // pred_check
      _
    $region15: #{tpu_custom_call.1} parent=1 // pred_check_branch
      %26 = sbr.rel (0) target = $region17
    $region16: #{tpu_custom_call.1} parent=1 // pred_region
      _
    $region17: #{tpu_custom_call.1} parent=1 // pred_fallthru
      _
    // Predicated region
    $region18: #{tpu_custom_call.1} parent=1 // pred_check
      _
    $region19: #{tpu_custom_call.1} parent=1 // pred_check_branch
      %28 = sbr.rel (0) target = $region21
    $region20: #{tpu_custom_call.1} parent=1 // pred_region
      %29 = dma.done [#allocation3], 128
    $region21: #{tpu_custom_call.1} parent=1 // pred_fallthru
      _
    %v30 = vld [vmem:[#allocation2] sm:$0xff]
    %v31 = vld [vmem:[%s1] sm:$0x1]
    %v32 = vld [vmem:[%s2] sm:$0x1]
    %v33 = vld [vmem:[%s3] sm:$0x1]
    %35 = vset.pattern.permute.xlu0 0
    %36 = vperm.xlu0 %35, %v30
    %v37 = vpop.permute.xlu0 %36
    %39 = vset.pattern.permute.xlu0 1
    %40 = vperm.xlu0 %39, %v30
    %v41 = vpop.permute.xlu0 %40
    %43 = vset.pattern.permute.xlu0 2
    %44 = vperm.xlu0 %43, %v30
    %v45 = vpop.permute.xlu0 %44
    %47 = vset.pattern.permute.xlu0 3
    %48 = vperm.xlu0 %47, %v30
    %v49 = vpop.permute.xlu0 %48
    %51 = vset.pattern.permute.xlu0 4
    %52 = vperm.xlu0 %51, %v30
    %v53 = vpop.permute.xlu0 %52
    %55 = vset.pattern.permute.xlu0 5
    %56 = vperm.xlu0 %55, %v30
    %v57 = vpop.permute.xlu0 %56
    %59 = vset.pattern.permute.xlu0 6
    %60 = vperm.xlu0 %59, %v30
    %v61 = vpop.permute.xlu0 %60
    %63 = vset.pattern.permute.xlu0 7
    %64 = vperm.xlu0 %63, %v30
    %v65 = vpop.permute.xlu0 %64
    %67 = vset.pattern.permute.xlu0 8
    %68 = vperm.xlu0 %67, %v30
    %v69 = vpop.permute.xlu0 %68
    %71 = vset.pattern.permute.xlu0 9
    %72 = vperm.xlu0 %71, %v30
    %v73 = vpop.permute.xlu0 %72
    %75 = vset.pattern.permute.xlu0 10
    %76 = vperm.xlu0 %75, %v30
    %v77 = vpop.permute.xlu0 %76
    %79 = vset.pattern.permute.xlu0 11
    %80 = vperm.xlu0 %79, %v30
    %v81 = vpop.permute.xlu0 %80
    %83 = vset.pattern.permute.xlu0 12
    %84 = vperm.xlu0 %83, %v30
    %v85 = vpop.permute.xlu0 %84
    %87 = vset.pattern.permute.xlu0 13
    %88 = vperm.xlu0 %87, %v30
    %v89 = vpop.permute.xlu0 %88
    %91 = vset.pattern.permute.xlu0 14
    %92 = vperm.xlu0 %91, %v30
    %v93 = vpop.permute.xlu0 %92
    %95 = vset.pattern.permute.xlu0 15
    %96 = vperm.xlu0 %95, %v30
    %v97 = vpop.permute.xlu0 %96
    %vm99 = vcmask 64512
    %v100 = vsel %vm99, %v37, %v41
    %vm101 = vcmask 130048
    %v102 = vsel %vm101, %v100, %v45
    %vm103 = vcmask 195584
    %v104 = vsel %vm103, %v102, %v49
    %vm105 = vcmask 261120
    %v106 = vsel %vm105, %v104, %v53
    %vm107 = vcmask 326656
    %v108 = vsel %vm107, %v106, %v57
    %vm109 = vcmask 392192
    %v110 = vsel %vm109, %v108, %v61
    %vm111 = vcmask 457728
    %v112 = vsel %vm111, %v110, %v65
    %vm113 = vcmask 523264
    %v114 = vsel %vm113, %v112, %v69
    %vm115 = vcmask 588800
    %v116 = vsel %vm115, %v114, %v73
    %vm117 = vcmask 654336
    %v118 = vsel %vm117, %v116, %v77
    %vm119 = vcmask 719872
    %v120 = vsel %vm119, %v118, %v81
    %vm121 = vcmask 785408
    %v122 = vsel %vm121, %v120, %v85
    %vm123 = vcmask 850944
    %v124 = vsel %vm123, %v122, %v89
    %vm125 = vcmask 916480
    %v126 = vsel %vm125, %v124, %v93
    %vm127 = vcmask 982016
    %v128 = vsel %vm127, %v126, %v97
    %v130 = vlaneseq
    %v131 = vshrl.u32 %v130, 7
    %v132 = vsub.s32 0, %v131
    %v133 = vrot.slane %v31, %v132
    %v135 = vmul.f32 %v128, %v133
    %v137 = vlaneseq
    %v138 = vshrl.u32 %v137, 7
    %v139 = vsub.s32 0, %v138
    %v140 = vrot.slane %v32, %v139
    %v142 = vadd.f32 %v135, %v140
    %v144 = vlaneseq
    %v145 = vshrl.u32 %v144, 7
    %v146 = vsub.s32 0, %v145
    %v147 = vrot.slane %v33, %v146
    %vm149 = vcmp.gt.f32.partialorder %v147, 0.5
    %v150 = vand.u32 2147483647, %v142
    %vm151 = vcmp.le.f32.partialorder %v150, 0.7853982
    %vm152 = vcmp.lt.s32.totalorder %v142, 0
    %v153 = vand.u32 %v142, 2139095040
    %v154 = vshrl.u32 %v153, 23
    %v155 = vsub.s32 %v154, 127
    %v156 = vand.u32 2147483647, %v142
    %v157 = vand.u32 %v156, 8388607
    %v158 = vor.u32 %v157, 8388608
    %v159 = vsub.s32 0, %v158
    %v160 = vadd.s32 %v155, 1
    %vm161 = vcmp.gt.s32.totalorder %v160, 0
    %v162 = vsel %vm161, %v160, 0
    %v163 = vshrl.u32 %v162, 5
    %v164 = vand.u32 %v162, 31
    %v165 = vsub.s32 32, %v164
    %v166 = vshrl.u32 683565275, %v165
    %v167 = vshll.u32 683565275, %v164
    %v168 = vshrl.u32 2475754826, %v165
    %v169 = vor.u32 %v167, %v168
    %v170 = vshll.u32 2475754826, %v164
    %v171 = vshrl.u32 2131351028, %v165
    %v172 = vor.u32 %v170, %v171
    %v173 = vshll.u32 2131351028, %v164
    %v174 = vshrl.u32 2102212464, %v165
    %v175 = vor.u32 %v173, %v174
    %v176 = vshll.u32 2102212464, %v164
    %v177 = vshrl.u32 920167782, %v165
    %v178 = vor.u32 %v176, %v177
    %v179 = vshll.u32 920167782, %v164
    %v180 = vshrl.u32 1326507024, %v165
    %v181 = vor.u32 %v179, %v180
    %vm182 = vcmp.lt.s32.totalorder %v163, 1
    %vm183 = vcmp.lt.s32.totalorder %v163, 2
    %vm184 = vcmp.lt.s32.totalorder %v163, 3
    %vm185 = vcmp.lt.s32.totalorder %v163, 4
    %v186 = vsel %vm182, %v166, %v169
    %v187 = vsel %vm185, %v175, 2102212464
    %v188 = vsel %vm184, %v172, %v187
    %v189 = vsel %vm183, %v186, %v188
    %v190 = vsel %vm182, %v169, %v172
    %v191 = vsel %vm185, %v178, 920167782
    %v192 = vsel %vm184, %v175, %v191
    %v193 = vsel %vm183, %v190, %v192
    %v194 = vsel %vm182, %v172, %v175
    %v195 = vsel %vm185, %v181, 1326507024
    %v196 = vsel %vm184, %v178, %v195
    %v197 = vsel %vm183, %v194, %v196
    %v198 = vshll.u32 %v158, 8
    %v199 = vmul.u32.u64.compose %v198, %v197
    %v200 = vextract.low.u32 %v199
    %v201 = vextract.high.u32 %v199
    %v202 = vmul.u32.u64.compose %v198, %v193
    %v203 = vextract.low.u32 %v202
    %v204 = vextract.high.u32 %v202
    %v205 = vmul.u32 %v198, %v189
    %v206 = vadd.s32 %v201, %v203
    %vm207 = vc.u32 %v201, %v203
    %v208 = vadd.s32 %v204, 1
    %v209 = vsel %vm207, %v208, %v204
    %v210 = vadd.s32 %v205, %v209
    %v211 = vadd.s32 %v210, 536870912
    %v212 = vshrl.u32 %v211, 30
    %v213 = vshll.u32 %v212, 30
    %v214 = vsub.s32 %v210, %v213
    %vm215 = vcmp.lt.s32.totalorder %v214, 0
    %v216 = vsub.s32 0, %v214
    %v217 = vsel %vm215, %v216, %v214
    %v218 = vclz %v217
    %v219 = vsub.s32 %v218, 2
    %vm220 = vcmp.gt.s32.totalorder 0, %v219
    %v221 = vsel %vm220, 0, %v219
    %v222 = vsub.s32 32, %v221
    %v223 = vshll.u32 %v214, %v221
    %v224 = vshrl.u32 %v206, %v222
    %v225 = vor.u32 %v223, %v224
    %v226 = vsub.s32 4294967266, %v221
    %v227 = vadd.s32 %v226, 127
    %v228 = vshll.u32 %v227, 23
    %v229 = vor.u32 4788187, %v228
    %v230 = vand.u32 2147483647, %v229
    %v232 = vcvt.s32.f32 %v225
    %v233 = vmul.f32 %v232, %v230
    %v234 = vxor.u32 %v233, 2147483648
    %v235 = vsel %vm152, %v234, %v233
    %v236 = vsub.s32 4, %v212
    %v237 = vsel %vm152, %v236, %v212
    %v238 = vsel %vm151, %v142, %v235
    %v239 = vsel %vm151, 0, %v237
    %v240 = vcosq.f32.pop %v238
    %v241 = vsinq.f32.pop %v238
    %vm242 = vweird.f32 %v142
    %v243 = vadd.s32 %v239, 3
    %v244 = vand.u32 %v243, 3
    %vm245 = vcmp.lt.s32.totalorder %v244, 2
    %vm246 = vcmp.eq.s32.totalorder %v244, 0
    %v247 = vxor.u32 %v241, 2147483648
    %v248 = vsel %vm246, %v240, %v247
    %vm249 = vcmp.eq.s32.totalorder %v244, 2
    %v250 = vxor.u32 %v240, 2147483648
    %v251 = vsel %vm249, %v250, %v241
    %v252 = vsel %vm245, %v248, %v251
    %v253 = vsel %vm242, nan, %v252
    %v254 = vsel %vm149, %v142, %v253
    %255 = vst [vmem:[#allocation5] sm:$0xff] %v254
    // Predicated region
    $region22: #{tpu_custom_call.1} parent=1 // pred_check
      _
    $region23: #{tpu_custom_call.1} parent=1 // pred_check_branch
      %257 = sbr.rel (0) target = $region25
    $region24: #{tpu_custom_call.1} parent=1 // pred_region
      %s259 = ssub.s32 128, 128
      %260 = vsyncadd [#allocation4], %s259
      %s262 = sshll.u32 [#allocation5], 4
      %s263 = int_to_ptr.vmem [resolvable:$true] %s262
      %265 = dma.vmem_to_hbm [thread:$0]  %s263, 128, %s4, [#allocation4]
    $region25: #{tpu_custom_call.1} parent=1 // pred_fallthru
      _
    // Predicated region
    $region26: #{tpu_custom_call.1} parent=1 // pred_check
      _
    $region27: #{tpu_custom_call.1} parent=1 // pred_check_branch
      %267 = sbr.rel (0) target = $region29
    $region28: #{tpu_custom_call.1} parent=1 // pred_region
      %268 = dma.done [#allocation4], 128
    $region29: #{tpu_custom_call.1} parent=1 // pred_fallthru
      _
    %269 = vsyncpa [#allocation3], 1
    %270 = vsyncpa [#allocation4], 1

</llo_original>
